<compile_context>
chip_gen: v7x
topology: tpu7x:2x2x1
jax: 0.10.0
libtpu: 0.0.40
codegen_flags: <defaults>
</compile_context>

<pallas_src>
import jax
import jax.numpy as jnp
from jax.experimental import pallas as pl
from jax.experimental.pallas import tpu as pltpu


# ---------------------------------------------------------------------------
# Kernel
# ---------------------------------------------------------------------------
def _h_swish_kernel(x_ref, o_ref):
    x = x_ref[...]
    dt = x.dtype
    # relu6(x + 3) / 6  ->  clamp(x + 3, 0, 6) * (1/6), in the native dtype.
    hsig = jnp.clip(
        x + jnp.asarray(3.0, dt), jnp.asarray(0.0, dt), jnp.asarray(6.0, dt)
    ) * jnp.asarray(1.0 / 6.0, dt)
    o_ref[...] = (x * hsig).astype(o_ref.dtype)


# ---------------------------------------------------------------------------
# Generation-aware tuning (trace-time; shapes / device kind are static)
# ---------------------------------------------------------------------------
_LANE_CANDIDATES = (8192, 4096, 2048, 1024, 512, 256, 128)
_MIN_BLOCKS_FOR_BIG = 8          # >= 2 TensorCores (v7x) + pipeline overlap
_BIG_SLAB_BYTES = 1 << 20        # 1 MiB


def _tpu_generation_params():
    """Return (target_tile_bytes, vmem_limit_bytes_or_None)."""
    kind = ""
    try:
        kind = jax.devices()[0].device_kind.lower()
    except Exception:
        pass
    if "v7" in kind or "7x" in kind:
        # 6 MiB tiles -> 24 MiB resident (double-buffered in+out); raise the
        # scoped limit for headroom under v7x's 64 MiB physical VMEM.
        return 6 * 1024 * 1024, 48 << 20
    if "v6" in kind:
        # 4 MiB tiles -> 16 MiB resident; fits v6e's 32 MiB scoped default.
        return 4 * 1024 * 1024, None
    # v5e (16 MiB scoped default) and unknown chips: stay at safe 2 MiB tiles.
    return 2 * 1024 * 1024, None


def _choose_2d_layout(n_elem, itemsize, target_tile_bytes):
    """Return (padded_n, W, rows, block_rows).  Pads only for ragged sizes."""
    # Dtype-aware sublane packing: f32 -> 8, bf16/f16 -> 16, int8/fp8 -> 32.
    pack = max(8, 32 // itemsize)

    # Prefer the widest lane dim that divides exactly AND keeps rows fully
    # packed along sublanes; otherwise the widest that simply divides.
    W = next(
        (w for w in _LANE_CANDIDATES
         if n_elem % w == 0 and (n_elem // w) % pack == 0),
        None,
    )
    if W is None:
        W = next((w for w in _LANE_CANDIDATES if n_elem % w == 0), None)

    if W is None:
        # Ragged fallback: one pad/slice copy.  Narrow lanes for tiny inputs
        # so we do not pad small odd shapes by up to ~1023 elements.
        W = 128 if n_elem < (1 << 16) else 1024
        padded_n = -(-n_elem // W) * W
    else:
        padded_n = n_elem
    rows = padded_n // W

    slab_bytes = padded_n * itemsize
    target_rows = max(pack, target_tile_bytes // (itemsize * W))

    # Guarantee a multi-step grid for slabs > ~1 MiB: grid=(1 or 2,) idles the
    # second v7x TensorCore and prevents prefetch/compute/writeback overlap.
    min_blocks = _MIN_BLOCKS_FOR_BIG if slab_bytes > _BIG_SLAB_BYTES else 1

    max_block_rows = min(rows, target_rows)
    if min_blocks > 1:
        max_block_rows = min(max_block_rows, max(pack, rows // min_blocks))

    if min_blocks == 1 and rows <= max_block_rows:
        # Small slab: single block equal to the full array (legal & cheap).
        return padded_n, W, rows, rows

    # block_rows: largest multiple of `pack` <= max_block_rows dividing rows.
    block_rows = None
    b = (max_block_rows // pack) * pack
    while b >= pack:
        if rows % b == 0:
            block_rows = b
            break
        b -= pack
    if block_rows is None:
        # Ragged row count: pad rows up to a multiple of the target block.
        block_rows = max(pack, (max_block_rows // pack) * pack)
        rows = -(-rows // block_rows) * block_rows
        padded_n = rows * W
    return padded_n, W, rows, block_rows


# ---------------------------------------------------------------------------
# Wrapper
# ---------------------------------------------------------------------------
def h_swish(x):
    """Elementwise hard-swish. Accepts any shape (documented for NCHW)."""
    orig_shape = x.shape
    orig_dtype = x.dtype
    n_elem = x.size
    if n_elem == 0:
        return x

    itemsize = jnp.dtype(orig_dtype).itemsize
    target_tile_bytes, vmem_limit = _tpu_generation_params()
    padded_n, W, rows, block_rows = _choose_2d_layout(
        n_elem, itemsize, target_tile_bytes
    )

    x_flat = jnp.ravel(x)
    if padded_n != n_elem:
        # Ragged fallback only; common NCHW sizes take the no-copy path above.
        x_flat = jnp.pad(x_flat, (0, padded_n - n_elem))
    x2d = x_flat.reshape(rows, W)

    grid = (rows // block_rows,)
    cost = pl.CostEstimate(
        flops=5 * padded_n,
        transcendentals=0,
        bytes_accessed=2 * padded_n * itemsize,
    )

    out2d = pl.pallas_call(
        _h_swish_kernel,
        out_shape=jax.ShapeDtypeStruct((rows, W), orig_dtype),
        grid_spec=pltpu.PrefetchScalarGridSpec(
            num_scalar_prefetch=0,
            grid=grid,
            in_specs=[pl.BlockSpec((block_rows, W), lambda i: (i, 0))],
            out_specs=pl.BlockSpec((block_rows, W), lambda i: (i, 0)),
        ),
        compiler_params=pltpu.CompilerParams(
            dimension_semantics=("parallel",),
            vmem_limit_bytes=vmem_limit,
        ),
        input_output_aliases={0: 0},
        cost_estimate=cost,
    )(x2d)

    out_flat = out2d.reshape(-1)
    if padded_n != n_elem:
        out_flat = out_flat[:n_elem]
    return out_flat.reshape(orig_shape)


# ---------------------------------------------------------------------------
# Reference + test
# ---------------------------------------------------------------------------
def _h_swish_ref_f32(x):
    xf = x.astype(jnp.float32)
    return xf * (jnp.clip(xf + 3.0, 0.0, 6.0) / 6.0)


if __name__ == "__main__":
    key = jax.random.PRNGKey(0)

    # Main case: NCHW input consistent with a conv feature map.
    x = jax.random.normal(key, (2, 4, 16, 16), dtype=jnp.float32) * 4.0
    out = jax.block_until_ready(h_swish(x))
    ref = _h_swish_ref_f32(x)
    assert out.shape == x.shape and out.dtype == x.dtype
    assert jnp.allclose(out, ref, atol=1e-6, rtol=1e-5)

    # Multi-block grid path (slab > 1 MiB -> >= 8 grid steps).
    k1, k2, k3 = jax.random.split(key, 3)
    x_big = jax.random.normal(k1, (4, 64, 64, 64), dtype=jnp.float32) * 4.0
    out_big = jax.block_until_ready(h_swish(x_big))
    assert jnp.allclose(out_big, _h_swish_ref_f32(x_big), atol=1e-6, rtol=1e-5)

    # Ragged-padding path.
    x_rag = jax.random.normal(k2, (2, 3, 5, 7), dtype=jnp.float32) * 4.0
    out_rag = jax.block_until_ready(h_swish(x_rag))
    assert jnp.allclose(out_rag, _h_swish_ref_f32(x_rag), atol=1e-6, rtol=1e-5)

    # bf16 path (native-dtype compute; looser tolerance vs f32 reference).
    x_bf = (jax.random.normal(k3, (2, 4, 16, 16), dtype=jnp.float32) * 4.0
            ).astype(jnp.bfloat16)
    out_bf = jax.block_until_ready(h_swish(x_bf))
    assert out_bf.dtype == jnp.bfloat16
    assert jnp.allclose(out_bf.astype(jnp.float32), _h_swish_ref_f32(x_bf),
                        atol=0.125, rtol=0.02)

    print("KERNEL_OK")
</pallas_src>

<mosaic_0001>
module attributes {stable_mosaic.version = 11 : i64} {
  func.func @_h_swish_kernel(%arg0: i32, %arg1: memref<8x256xf32, #tpu.memory_space<vmem>>, %arg2: memref<8x256xf32, #tpu.memory_space<vmem>>) attributes {dimension_semantics = [#tpu.dimension_semantics<parallel>], iteration_bounds = array<i64: 1>, scalar_prefetch = 0 : i64, scratch_operands = 0 : i64, tpu.core_type = #tpu.core_type<tc>, window_params = [{transform_indices = @transform_0, window_bounds = array<i64: 8, 256>}, {transform_indices = @transform_1, window_bounds = array<i64: 8, 256>}]} {
    %c0 = arith.constant 0 : index
    %c0_0 = arith.constant 0 : index
    %0 = vector.load %arg1[%c0, %c0_0] : memref<8x256xf32, #tpu.memory_space<vmem>>, vector<8x256xf32>
    %cst = arith.constant 3.000000e+00 : f32
    %1 = vector.broadcast %cst : f32 to vector<8x256xf32>
    %2 = arith.addf %0, %1 : vector<8x256xf32>
    %cst_1 = arith.constant 0.000000e+00 : f32
    %cst_2 = arith.constant 6.000000e+00 : f32
    %3 = vector.broadcast %cst_1 : f32 to vector<8x256xf32>
    %4 = arith.maximumf %3, %2 : vector<8x256xf32>
    %5 = vector.broadcast %cst_2 : f32 to vector<8x256xf32>
    %6 = arith.minimumf %5, %4 : vector<8x256xf32>
    %cst_3 = arith.constant 0.166666672 : f32
    %7 = vector.broadcast %cst_3 : f32 to vector<8x256xf32>
    %8 = arith.mulf %6, %7 : vector<8x256xf32>
    %9 = arith.mulf %0, %8 : vector<8x256xf32>
    %c0_4 = arith.constant 0 : index
    %c0_5 = arith.constant 0 : index
    %10 = vector.load %arg2[%c0_4, %c0_5] : memref<8x256xf32, #tpu.memory_space<vmem>>, vector<8x256xf32>
    tpu.vector_store %arg2[%c0_4, %c0_5], %9 {strides = array<i32>} : memref<8x256xf32, #tpu.memory_space<vmem>>, vector<8x256xf32>,
    return
  }
  func.func @transform_0(%arg0: i32) -> (i32, i32) {
    %c0_i32 = arith.constant 0 : i32
    %c0_i32_0 = arith.constant 0 : i32
    return %arg0, %c0_i32 : i32, i32
  }
  func.func @transform_1(%arg0: i32) -> (i32, i32) {
    %c0_i32 = arith.constant 0 : i32
    %c0_i32_0 = arith.constant 0 : i32
    return %arg0, %c0_i32 : i32, i32
  }
}

</mosaic_0001>

<llo_original>
// kernel: tpu_custom_call.1
$region0: #{tpu_custom_call.1}
  #allocation0 [shape = 'u32[]', space=smem, size = 0x4, offset = 0x4, fixed_abs, tag = 'smem constant byte address 0x4 - core index']
  #allocation1 [shape = 'u32[144,128]{1,0:T(1,128)}', space=vmem, size = 0x12000, scoped, tag = 'internal scratch']
  %s0 = inlined_call_operand.hbm [shape: f32[8,256], index: 0, kind: input, shape index: {}, may-alias: {0,1}]
  %s1 = inlined_call_operand.hbm [shape: f32[8,256], index: 1, kind: output, shape index: {}, may-alias: {0,1}]
  %s2 = sld [smem:[#allocation0]]
  $region18: #{tpu_custom_call.1} parent=0
    _
  %s4 = ssub.s32 1, %s2
  %s5 = scalar_select 0, %s4, %s2
  $region1: #{tpu_custom_call.1} parent=0
    #allocation2 [shape = 'u8[8192]{0}', space=vmem, size = 0x2000, scoped, tag = 'input window, operand 0, single buffered']
    #allocation3 [shape = 's32[1]{0}', space=sflag, size = 0x4, scoped, tag = 'scoped memory for tpu_custom_call.1']
    #allocation4 [shape = 's32[1]{0}', space=sflag, size = 0x4, scoped, tag = 'scoped memory for tpu_custom_call.1']
    #allocation5 [shape = 'u8[8192]{0}', space=vmem, size = 0x2000, scoped, tag = 'output window, operand 0, single buffered']
    %6 = vsyncpa [#allocation3], 0
    %7 = vsyncpa [#allocation4], 0
    // Predicated region
    $region2: #{tpu_custom_call.1} parent=1 // pred_check
      _
    $region3: #{tpu_custom_call.1} parent=1 // pred_check_branch
      %9 = sbr.rel (0) target = $region5
    $region4: #{tpu_custom_call.1} parent=1 // pred_region
      %s11 = ssub.s32 256, 256
      %12 = vsyncadd [#allocation3], %s11
      %s14 = sshll.u32 [#allocation2], 4
      %s15 = int_to_ptr.vmem [resolvable:$true] %s14
      %17 = dma.hbm_to_vmem [thread:$0]  %s0, 256, %s15, [#allocation3]
    $region5: #{tpu_custom_call.1} parent=1 // pred_fallthru
      _
    // Predicated region
    $region6: #{tpu_custom_call.1} parent=1 // pred_check
      _
    $region7: #{tpu_custom_call.1} parent=1 // pred_check_branch
      %19 = sbr.rel (0) target = $region9
    $region8: #{tpu_custom_call.1} parent=1 // pred_region
      %20 = dma.done [#allocation3], 256
    $region9: #{tpu_custom_call.1} parent=1 // pred_fallthru
      _
    %v21 = vld [vmem:[#allocation2] sm:$0xff]
    %v22 = vld [vmem:[#allocation2 + $0x8] sm:$0xff]
    %v23 = vadd.f32 %v21, 3.0
    %v24 = vadd.f32 %v22, 3.0
    %v25 = vmax.f32 %v23, 0.0
    %v26 = vmax.f32 %v24, 0.0
    %v27 = vmin.f32 %v25, 6.0
    %v28 = vmin.f32 %v26, 6.0
    %v29 = vmul.f32 %v27, 0.16666667
    %v30 = vmul.f32 %v28, 0.16666667
    %v31 = vmul.f32 %v21, %v29
    %v32 = vmul.f32 %v22, %v30
    %33 = vst [vmem:[#allocation5] sm:$0xff] %v31
    %34 = vst [vmem:[#allocation5 + $0x8] sm:$0xff] %v32
    // Predicated region
    $region10: #{tpu_custom_call.1} parent=1 // pred_check
      _
    $region11: #{tpu_custom_call.1} parent=1 // pred_check_branch
      %36 = sbr.rel (0) target = $region13
    $region12: #{tpu_custom_call.1} parent=1 // pred_region
      %s38 = ssub.s32 256, 256
      %39 = vsyncadd [#allocation4], %s38
      %s41 = sshll.u32 [#allocation5], 4
      %s42 = int_to_ptr.vmem [resolvable:$true] %s41
      %44 = dma.vmem_to_hbm [thread:$0]  %s42, 256, %s1, [#allocation4]
    $region13: #{tpu_custom_call.1} parent=1 // pred_fallthru
      _
    // Predicated region
    $region14: #{tpu_custom_call.1} parent=1 // pred_check
      _
    $region15: #{tpu_custom_call.1} parent=1 // pred_check_branch
      %46 = sbr.rel (0) target = $region17
    $region16: #{tpu_custom_call.1} parent=1 // pred_region
      %47 = dma.done [#allocation4], 256
    $region17: #{tpu_custom_call.1} parent=1 // pred_fallthru
      _
    %48 = vsyncpa [#allocation3], 1
    %49 = vsyncpa [#allocation4], 1

</llo_original>
